<compile_context>
chip_gen: v6e
topology: v6e:2x2x1
jax: 0.10.0
libtpu: 0.0.40
codegen_flags: <defaults>
</compile_context>

<pallas_src>
import functools
import math

import jax
import jax.numpy as jnp
import numpy as np
from jax.experimental import pallas as pl
from jax.experimental.pallas import tpu as pltpu


def _round_up(x, m):
    return ((x + m - 1) // m) * m


def _vmem_capacity_bytes():
    """Physical per-core VMEM; conservative 64 MiB (v7x) if undiscoverable."""
    try:
        info = pltpu.get_tpu_info()
        for attr in ("vmem_capacity_bytes", "vmem_bytes", "vmem_size_bytes"):
            val = getattr(info, attr, None)
            if val:
                return int(val)
    except Exception:
        pass
    return 64 << 20


# ----------------------------------------------------------------------------
# Kernel: fused MLP over one batch tile.
# refs = (x, W0, b0, W1, b1, ..., W_{L-1}, b_{L-1}, out)
# ----------------------------------------------------------------------------
def mlp_kernel(*refs, n_layers):
    x_ref = refs[0]
    param_refs = refs[1:-1]
    out_ref = refs[-1]

    x = x_ref[...]
    for i in range(n_layers):
        w_ref = param_refs[2 * i]
        b_ref = param_refs[2 * i + 1]
        # MXU matmul in the weights' dtype with f32 accumulation; bias-add and
        # ReLU stay in f32 on the VPU (v5e has no bf16 VPU).
        x = jnp.dot(x.astype(w_ref.dtype), w_ref[...],
                    preferred_element_type=jnp.float32) + b_ref[...]
        if i < n_layers - 1:
            x = jnp.maximum(x, 0.0)
    out_ref[...] = x.astype(out_ref.dtype)


# ----------------------------------------------------------------------------
# One-time parameter preparation (hoisted out of the per-call path).
# ----------------------------------------------------------------------------
def prepare_interaction_params(params, *, compute_dtype=jnp.bfloat16):
    """Cast weights to the MXU dtype and reshape biases once.

    `params` is a list of (W, b) with W of shape (in_features, out_features).
    NOTE: PyTorch's nn.Linear stores weight as (out_features, in_features) and
    computes x @ W.T; transpose checkpoint weights before calling.
    """
    prepared = []
    for w, b in params:
        prepared.append((jnp.asarray(w, compute_dtype),
                         jnp.asarray(b, jnp.float32).reshape(1, -1)))
    return tuple(prepared)


# ----------------------------------------------------------------------------
# Wrapper: group encoder outputs, tile batch grid, pick per-chip VMEM budget.
# ----------------------------------------------------------------------------
def interaction_forward(encoded, prepared_params, *, batch_tile=None):
    """encoded: list of (B, d_j) arrays; prepared_params from prepare_interaction_params."""
    # TODO(synk): only method == 'cat' (+ MLP head) is implemented; other
    # init_inter_layer interaction methods are out of scope for this kernel.
    n_layers = len(prepared_params)
    compute_dtype = prepared_params[0][0].dtype
    act_itemsize = jnp.dtype(compute_dtype).itemsize

    B = int(encoded[0].shape[0])
    # 'cat' interaction: group encoder outputs into one lane-contiguous slab
    # (single fused concat+cast) so the first layer's K is sum(d_j), not
    # sum(round_up(d_j, 128)).  The kernel then fuses the entire MLP.
    x = jnp.concatenate([e.astype(compute_dtype) for e in encoded], axis=1)
    K = int(x.shape[1])
    widths = [int(w.shape[1]) for w, _ in prepared_params]
    head = widths[-1]
    assert int(prepared_params[0][0].shape[0]) == K, (
        "first Linear in_features must equal the sum of encoder output dims")

    flat_params = [a for wb in prepared_params for a in wb]
    param_bytes = sum(int(a.size) * a.dtype.itemsize for a in flat_params)

    # Per-generation VMEM budget: ~100 MiB on 128-MiB chips (v5e/v6e),
    # ~50 MiB on v7x (64 MiB per TensorCore).
    vmem_cap = _vmem_capacity_bytes()
    budget = int(vmem_cap * 0.78)

    max_width = max([K] + widths)

    def vmem_estimate(t):
        est = 2 * t * K * act_itemsize            # double-buffered activation in
        est += 2 * t * head * 4                   # double-buffered output block
        est += param_bytes                        # resident single-buffered params
        est += 3 * t * max_width * 4              # in-body f32 temporaries
        return est

    # Batch tile: multiple of 16 for bf16 sublane packing (8 for f32); default
    # 512 on 128-MiB chips / 256 on v7x; never larger than the batch.
    row_align = 16 if act_itemsize <= 2 else 8
    if batch_tile is None:
        batch_tile = 512 if vmem_cap >= (100 << 20) else 256
    batch_tile = max(row_align, _round_up(int(batch_tile), row_align))

    if B <= row_align:
        tb = B                                    # full-batch block (always legal)
    else:
        tb = max(row_align, min(batch_tile, (B // row_align) * row_align))
        # Guarantee >= 2 grid steps so ("parallel",) can shard the batch across
        # v7x's two TensorCores (negligible cost on single-TC v5e/v6e).
        if pl.cdiv(B, tb) < 2:
            tb = max(row_align, _round_up(pl.cdiv(B, 2), row_align))
        # Fallback: shrink the tile if the VMEM estimate exceeds the budget.
        while tb > row_align and vmem_estimate(tb) > budget:
            tb = max(row_align, _round_up(tb // 2, row_align))

    grid = (pl.cdiv(B, tb),)

    # Advisory cost estimate for XLA's scheduler.
    dims = [K] + widths
    flops = 2 * B * sum(a * b for a, b in zip(dims[:-1], dims[1:]))
    bytes_accessed = B * K * act_itemsize + param_bytes + B * head * 4
    cost = pl.CostEstimate(flops=flops, transcendentals=0,
                           bytes_accessed=bytes_accessed)

    kernel = functools.partial(mlp_kernel, n_layers=n_layers)
    out_shape = jax.ShapeDtypeStruct((B, head), jnp.float32)
    out_spec = pl.BlockSpec((tb, head), lambda i: (i, 0))
    compiler_params = pltpu.CompilerParams(
        dimension_semantics=("parallel",),
        vmem_limit_bytes=budget)

    def call(param_pipeline_mode):
        in_specs = [pl.BlockSpec((tb, K), lambda i: (i, 0))]
        for a in flat_params:
            if param_pipeline_mode is None:
                in_specs.append(pl.BlockSpec(a.shape, lambda i: (0, 0)))
            else:
                in_specs.append(pl.BlockSpec(a.shape, lambda i: (0, 0),
                                             pipeline_mode=param_pipeline_mode))
        return pl.pallas_call(
            kernel,
            out_shape=out_shape,
            grid=grid,
            in_specs=in_specs,
            out_specs=out_spec,
            compiler_params=compiler_params,
            cost_estimate=cost,
        )(x, *flat_params)

    # Grid-invariant parameters: request single buffering (halves resident
    # weight VMEM -- matters most under v7x's 64 MiB).  Fall back to default
    # double buffering if this JAX/Mosaic build rejects pipeline_mode.
    buffered = getattr(pl, "Buffered", None)
    if buffered is not None:
        try:
            return call(buffered(1))
        except Exception:
            pass
    return call(None)


# ----------------------------------------------------------------------------
# Deterministic parameter init (PyTorch nn.Linear default: U(-1/sqrt(in), +1/sqrt(in)))
# ----------------------------------------------------------------------------
def init_mlp_params(key, input_dim, hidden_layers, head):
    dims = [input_dim] + list(hidden_layers) + [head]
    params = []
    for din, dout in zip(dims[:-1], dims[1:]):
        key, kw, kb = jax.random.split(key, 3)
        bound = 1.0 / math.sqrt(din)
        w = jax.random.uniform(kw, (din, dout), jnp.float32, -bound, bound)
        b = jax.random.uniform(kb, (dout,), jnp.float32, -bound, bound)
        params.append((w, b))
    return params


# Pure-JAX reference of the PyTorch forward (for correctness check).
def reference_forward(encoded, params):
    x = jnp.concatenate(encoded, axis=1)
    for i, (w, b) in enumerate(params):
        x = x @ w + b
        if i < len(params) - 1:
            x = jnp.maximum(x, 0.0)
    return x


if __name__ == "__main__":
    # ---- Case 1: toy shapes (two encoder outputs, scaled-down MLP) ----------
    key = jax.random.PRNGKey(0)
    k0, k1, kp = jax.random.split(key, 3)
    batch, d0, d1 = 2, 64, 64
    enc = [jax.random.normal(k0, (batch, d0), jnp.float32),
           jax.random.normal(k1, (batch, d1), jnp.float32)]
    params = init_mlp_params(kp, d0 + d1, [128, 64], 16)
    ref = reference_forward(enc, params)

    # f32 path: exact check.
    p_f32 = prepare_interaction_params(params, compute_dtype=jnp.float32)
    out_f32 = jax.block_until_ready(interaction_forward(enc, p_f32))
    np.testing.assert_allclose(np.asarray(out_f32), np.asarray(ref),
                               rtol=1e-5, atol=1e-5)

    # bf16 MXU path (params prepared once, reused across calls): loose tol.
    p_bf16 = prepare_interaction_params(params)
    out_bf16 = jax.block_until_ready(interaction_forward(enc, p_bf16))
    np.testing.assert_allclose(np.asarray(out_bf16), np.asarray(ref),
                               rtol=2e-2, atol=2e-2)

    # ---- Case 2: multi-step batch grid + ragged (non-128) feature dims ------
    k2, k3, k4, kp2 = jax.random.split(jax.random.PRNGKey(1), 4)
    batch2 = 48
    enc2 = [jax.random.normal(k2, (batch2, 40), jnp.float32),
            jax.random.normal(k3, (batch2, 24), jnp.float32),
            jax.random.normal(k4, (batch2, 64), jnp.float32)]
    params2 = init_mlp_params(kp2, 40 + 24 + 64, [96], 10)
    ref2 = reference_forward(enc2, params2)

    # Explicit small tile -> 3 grid steps, f32 exact.
    p2_f32 = prepare_interaction_params(params2, compute_dtype=jnp.float32)
    out2 = jax.block_until_ready(
        interaction_forward(enc2, p2_f32, batch_tile=16))
    np.testing.assert_allclose(np.asarray(out2), np.asarray(ref2),
                               rtol=1e-5, atol=1e-5)

    # Default tile selection: exercises the >=2-step split and a partial
    # boundary batch block, bf16 MXU path.
    p2_bf16 = prepare_interaction_params(params2)
    out2_bf16 = jax.block_until_ready(interaction_forward(enc2, p2_bf16))
    np.testing.assert_allclose(np.asarray(out2_bf16), np.asarray(ref2),
                               rtol=2e-2, atol=2e-2)

    print("KERNEL_OK")
</pallas_src>

<mosaic_0001>
module attributes {stable_mosaic.version = 11 : i64} {
  func.func @mlp_kernel(%arg0: i32, %arg1: memref<2x128xf32, #tpu.memory_space<vmem>>, %arg2: memref<128x128xf32, #tpu.memory_space<vmem>>, %arg3: memref<1x128xf32, #tpu.memory_space<vmem>>, %arg4: memref<128x64xf32, #tpu.memory_space<vmem>>, %arg5: memref<1x64xf32, #tpu.memory_space<vmem>>, %arg6: memref<64x16xf32, #tpu.memory_space<vmem>>, %arg7: memref<1x16xf32, #tpu.memory_space<vmem>>, %arg8: memref<2x16xf32, #tpu.memory_space<vmem>>) attributes {dimension_semantics = [#tpu.dimension_semantics<parallel>], iteration_bounds = array<i64: 1>, scalar_prefetch = 0 : i64, scratch_operands = 0 : i64, tpu.core_type = #tpu.core_type<tc>, window_params = [{transform_indices = @transform_0, window_bounds = array<i64: 2, 128>}, {pipeline_mode = #tpu.pipeline_mode<synchronous>, transform_indices = @transform_1, window_bounds = array<i64: 128, 128>}, {pipeline_mode = #tpu.pipeline_mode<synchronous>, transform_indices = @transform_2, window_bounds = array<i64: 1, 128>}, {pipeline_mode = #tpu.pipeline_mode<synchronous>, transform_indices = @transform_3, window_bounds = array<i64: 128, 64>}, {pipeline_mode = #tpu.pipeline_mode<synchronous>, transform_indices = @transform_4, window_bounds = array<i64: 1, 64>}, {pipeline_mode = #tpu.pipeline_mode<synchronous>, transform_indices = @transform_5, window_bounds = array<i64: 64, 16>}, {pipeline_mode = #tpu.pipeline_mode<synchronous>, transform_indices = @transform_6, window_bounds = array<i64: 1, 16>}, {transform_indices = @transform_7, window_bounds = array<i64: 2, 16>}]} {
    %c0 = arith.constant 0 : index
    %c0_0 = arith.constant 0 : index
    %0 = vector.load %arg1[%c0, %c0_0] : memref<2x128xf32, #tpu.memory_space<vmem>>, vector<2x128xf32>
    %c0_1 = arith.constant 0 : index
    %c0_2 = arith.constant 0 : index
    %1 = vector.load %arg2[%c0_1, %c0_2] : memref<128x128xf32, #tpu.memory_space<vmem>>, vector<128x128xf32>
    %cst = arith.constant dense<0.000000e+00> : vector<2x128xf32>
    %2 = tpu.matmul %0, %1, %cst {dimension_numbers = #tpu.dot_dimension_numbers<[1], [0], [0], [1], [0, 0, 1, 1], [], []>} : vector<2x128xf32>, vector<128x128xf32>, vector<2x128xf32> -> vector<2x128xf32>
    %c0_3 = arith.constant 0 : index
    %c0_4 = arith.constant 0 : index
    %3 = vector.load %arg3[%c0_3, %c0_4] : memref<1x128xf32, #tpu.memory_space<vmem>>, vector<1x128xf32>
    %4 = vector.broadcast %3 : vector<1x128xf32> to vector<2x128xf32>
    %5 = arith.addf %2, %4 : vector<2x128xf32>
    %cst_5 = arith.constant 0.000000e+00 : f32
    %6 = vector.broadcast %cst_5 : f32 to vector<2x128xf32>
    %7 = arith.maximumf %5, %6 : vector<2x128xf32>
    %c0_6 = arith.constant 0 : index
    %c0_7 = arith.constant 0 : index
    %8 = vector.load %arg4[%c0_6, %c0_7] : memref<128x64xf32, #tpu.memory_space<vmem>>, vector<128x64xf32>
    %cst_8 = arith.constant dense<0.000000e+00> : vector<2x64xf32>
    %9 = tpu.matmul %7, %8, %cst_8 {dimension_numbers = #tpu.dot_dimension_numbers<[1], [0], [0], [1], [0, 0, 1, 1], [], []>} : vector<2x128xf32>, vector<128x64xf32>, vector<2x64xf32> -> vector<2x64xf32>
    %c0_9 = arith.constant 0 : index
    %c0_10 = arith.constant 0 : index
    %10 = vector.load %arg5[%c0_9, %c0_10] : memref<1x64xf32, #tpu.memory_space<vmem>>, vector<1x64xf32>
    %11 = vector.broadcast %10 : vector<1x64xf32> to vector<2x64xf32>
    %12 = arith.addf %9, %11 : vector<2x64xf32>
    %cst_11 = arith.constant 0.000000e+00 : f32
    %13 = vector.broadcast %cst_11 : f32 to vector<2x64xf32>
    %14 = arith.maximumf %12, %13 : vector<2x64xf32>
    %c0_12 = arith.constant 0 : index
    %c0_13 = arith.constant 0 : index
    %15 = vector.load %arg6[%c0_12, %c0_13] : memref<64x16xf32, #tpu.memory_space<vmem>>, vector<64x16xf32>
    %cst_14 = arith.constant dense<0.000000e+00> : vector<2x16xf32>
    %16 = tpu.matmul %14, %15, %cst_14 {dimension_numbers = #tpu.dot_dimension_numbers<[1], [0], [0], [1], [0, 0, 1, 1], [], []>} : vector<2x64xf32>, vector<64x16xf32>, vector<2x16xf32> -> vector<2x16xf32>
    %c0_15 = arith.constant 0 : index
    %c0_16 = arith.constant 0 : index
    %17 = vector.load %arg7[%c0_15, %c0_16] : memref<1x16xf32, #tpu.memory_space<vmem>>, vector<1x16xf32>
    %18 = vector.broadcast %17 : vector<1x16xf32> to vector<2x16xf32>
    %19 = arith.addf %16, %18 : vector<2x16xf32>
    %c0_17 = arith.constant 0 : index
    %c0_18 = arith.constant 0 : index
    %20 = vector.load %arg8[%c0_17, %c0_18] : memref<2x16xf32, #tpu.memory_space<vmem>>, vector<2x16xf32>
    tpu.vector_store %arg8[%c0_17, %c0_18], %19 {strides = array<i32>} : memref<2x16xf32, #tpu.memory_space<vmem>>, vector<2x16xf32>,
    return
  }
  func.func @transform_0(%arg0: i32) -> (i32, i32) {
    %c0_i32 = arith.constant 0 : i32
    %c0_i32_0 = arith.constant 0 : i32
    return %arg0, %c0_i32 : i32, i32
  }
  func.func @transform_1(%arg0: i32) -> (i32, i32) {
    %c0_i32 = arith.constant 0 : i32
    %c0_i32_0 = arith.constant 0 : i32
    %c0_i32_1 = arith.constant 0 : i32
    return %c0_i32, %c0_i32_0 : i32, i32
  }
  func.func @transform_2(%arg0: i32) -> (i32, i32) {
    %c0_i32 = arith.constant 0 : i32
    %c0_i32_0 = arith.constant 0 : i32
    %c0_i32_1 = arith.constant 0 : i32
    return %c0_i32, %c0_i32_0 : i32, i32
  }
  func.func @transform_3(%arg0: i32) -> (i32, i32) {
    %c0_i32 = arith.constant 0 : i32
    %c0_i32_0 = arith.constant 0 : i32
    %c0_i32_1 = arith.constant 0 : i32
    return %c0_i32, %c0_i32_0 : i32, i32
  }
  func.func @transform_4(%arg0: i32) -> (i32, i32) {
    %c0_i32 = arith.constant 0 : i32
    %c0_i32_0 = arith.constant 0 : i32
    %c0_i32_1 = arith.constant 0 : i32
    return %c0_i32, %c0_i32_0 : i32, i32
  }
  func.func @transform_5(%arg0: i32) -> (i32, i32) {
    %c0_i32 = arith.constant 0 : i32
    %c0_i32_0 = arith.constant 0 : i32
    %c0_i32_1 = arith.constant 0 : i32
    return %c0_i32, %c0_i32_0 : i32, i32
  }
  func.func @transform_6(%arg0: i32) -> (i32, i32) {
    %c0_i32 = arith.constant 0 : i32
    %c0_i32_0 = arith.constant 0 : i32
    %c0_i32_1 = arith.constant 0 : i32
    return %c0_i32, %c0_i32_0 : i32, i32
  }
  func.func @transform_7(%arg0: i32) -> (i32, i32) {
    %c0_i32 = arith.constant 0 : i32
    %c0_i32_0 = arith.constant 0 : i32
    return %arg0, %c0_i32 : i32, i32
  }
}

module attributes {stable_mosaic.version = 11 : i64} {
  func.func @mlp_kernel(%arg0: i32, %arg1: memref<2x128xf32, #tpu.memory_space<vmem>>, %arg2: memref<128x128xf32, #tpu.memory_space<vmem>>, %arg3: memref<1x128xf32, #tpu.memory_space<vmem>>, %arg4: memref<128x64xf32, #tpu.memory_space<vmem>>, %arg5: memref<1x64xf32, #tpu.memory_space<vmem>>, %arg6: memref<64x16xf32, #tpu.memory_space<vmem>>, %arg7: memref<1x16xf32, #tpu.memory_space<vmem>>, %arg8: memref<2x16xf32, #tpu.memory_space<vmem>>) attributes {dimension_semantics = [#tpu.dimension_semantics<parallel>], iteration_bounds = array<i64: 1>, scalar_prefetch = 0 : i64, scratch_operands = 0 : i64, tpu.core_type = #tpu.core_type<tc>, window_params = [{transform_indices = @transform_0, window_bounds = array<i64: 2, 128>}, {pipeline_mode = #tpu.pipeline_mode<synchronous>, transform_indices = @transform_1, window_bounds = array<i64: 128, 128>}, {pipeline_mode = #tpu.pipeline_mode<synchronous>, transform_indices = @transform_2, window_bounds = array<i64: 1, 128>}, {pipeline_mode = #tpu.pipeline_mode<synchronous>, transform_indices = @transform_3, window_bounds = array<i64: 128, 64>}, {pipeline_mode = #tpu.pipeline_mode<synchronous>, transform_indices = @transform_4, window_bounds = array<i64: 1, 64>}, {pipeline_mode = #tpu.pipeline_mode<synchronous>, transform_indices = @transform_5, window_bounds = array<i64: 64, 16>}, {pipeline_mode = #tpu.pipeline_mode<synchronous>, transform_indices = @transform_6, window_bounds = array<i64: 1, 16>}, {transform_indices = @transform_7, window_bounds = array<i64: 2, 16>}]} {
    %c0 = arith.constant 0 : index
    %c0_0 = arith.constant 0 : index
    %0 = vector.load %arg1[%c0, %c0_0] : memref<2x128xf32, #tpu.memory_space<vmem>>, vector<2x128xf32>
    %c0_1 = arith.constant 0 : index
    %c0_2 = arith.constant 0 : index
    %1 = vector.load %arg2[%c0_1, %c0_2] : memref<128x128xf32, #tpu.memory_space<vmem>>, vector<128x128xf32>
    %cst = arith.constant dense<0.000000e+00> : vector<2x128xf32>
    %2 = tpu.matmul %0, %1, %cst {dimension_numbers = #tpu.dot_dimension_numbers<[1], [0], [0], [1], [0, 0, 1, 1], [], []>} : vector<2x128xf32>, vector<128x128xf32>, vector<2x128xf32> -> vector<2x128xf32>
    %c0_3 = arith.constant 0 : index
    %c0_4 = arith.constant 0 : index
    %3 = vector.load %arg3[%c0_3, %c0_4] : memref<1x128xf32, #tpu.memory_space<vmem>>, vector<1x128xf32>
    %4 = vector.broadcast %3 : vector<1x128xf32> to vector<2x128xf32>
    %5 = arith.addf %2, %4 : vector<2x128xf32>
    %cst_5 = arith.constant 0.000000e+00 : f32
    %6 = vector.broadcast %cst_5 : f32 to vector<2x128xf32>
    %7 = arith.maximumf %5, %6 : vector<2x128xf32>
    %c0_6 = arith.constant 0 : index
    %c0_7 = arith.constant 0 : index
    %8 = vector.load %arg4[%c0_6, %c0_7] : memref<128x64xf32, #tpu.memory_space<vmem>>, vector<128x64xf32>
    %cst_8 = arith.constant dense<0.000000e+00> : vector<2x64xf32>
    %9 = tpu.matmul %7, %8, %cst_8 {dimension_numbers = #tpu.dot_dimension_numbers<[1], [0], [0], [1], [0, 0, 1, 1], [], []>} : vector<2x128xf32>, vector<128x64xf32>, vector<2x64xf32> -> vector<2x64xf32>
    %c0_9 = arith.constant 0 : index
    %c0_10 = arith.constant 0 : index
    %10 = vector.load %arg5[%c0_9, %c0_10] : memref<1x64xf32, #tpu.memory_space<vmem>>, vector<1x64xf32>
    %11 = vector.broadcast %10 : vector<1x64xf32> to vector<2x64xf32>
    %12 = arith.addf %9, %11 : vector<2x64xf32>
    %cst_11 = arith.constant 0.000000e+00 : f32
    %13 = vector.broadcast %cst_11 : f32 to vector<2x64xf32>
    %14 = arith.maximumf %12, %13 : vector<2x64xf32>
    %c0_12 = arith.constant 0 : index
    %c0_13 = arith.constant 0 : index
    %15 = vector.load %arg6[%c0_12, %c0_13] : memref<64x16xf32, #tpu.memory_space<vmem>>, vector<64x16xf32>
    %cst_14 = arith.constant dense<0.000000e+00> : vector<2x16xf32>
    %16 = tpu.matmul %14, %15, %cst_14 {dimension_numbers = #tpu.dot_dimension_numbers<[1], [0], [0], [1], [0, 0, 1, 1], [], []>} : vector<2x64xf32>, vector<64x16xf32>, vector<2x16xf32> -> vector<2x16xf32>
    %c0_15 = arith.constant 0 : index
    %c0_16 = arith.constant 0 : index
    %17 = vector.load %arg7[%c0_15, %c0_16] : memref<1x16xf32, #tpu.memory_space<vmem>>, vector<1x16xf32>
    %18 = vector.broadcast %17 : vector<1x16xf32> to vector<2x16xf32>
    %19 = arith.addf %16, %18 : vector<2x16xf32>
    %c0_17 = arith.constant 0 : index
    %c0_18 = arith.constant 0 : index
    %20 = vector.load %arg8[%c0_17, %c0_18] : memref<2x16xf32, #tpu.memory_space<vmem>>, vector<2x16xf32>
    tpu.vector_store %arg8[%c0_17, %c0_18], %19 {strides = array<i32>} : memref<2x16xf32, #tpu.memory_space<vmem>>, vector<2x16xf32>,
    return
  }
  func.func @transform_0(%arg0: i32) -> (i32, i32) {
    %c0_i32 = arith.constant 0 : i32
    %c0_i32_0 = arith.constant 0 : i32
    return %arg0, %c0_i32 : i32, i32
  }
  func.func @transform_1(%arg0: i32) -> (i32, i32) {
    %c0_i32 = arith.constant 0 : i32
    %c0_i32_0 = arith.constant 0 : i32
    %c0_i32_1 = arith.constant 0 : i32
    return %c0_i32, %c0_i32_0 : i32, i32
  }
  func.func @transform_2(%arg0: i32) -> (i32, i32) {
    %c0_i32 = arith.constant 0 : i32
    %c0_i32_0 = arith.constant 0 : i32
    %c0_i32_1 = arith.constant 0 : i32
    return %c0_i32, %c0_i32_0 : i32, i32
  }
  func.func @transform_3(%arg0: i32) -> (i32, i32) {
    %c0_i32 = arith.constant 0 : i32
    %c0_i32_0 = arith.constant 0 : i32
    %c0_i32_1 = arith.constant 0 : i32
    return %c0_i32, %c0_i32_0 : i32, i32
  }
  func.func @transform_4(%arg0: i32) -> (i32, i32) {
    %c0_i32 = arith.constant 0 : i32
    %c0_i32_0 = arith.constant 0 : i32
    %c0_i32_1 = arith.constant 0 : i32
    return %c0_i32, %c0_i32_0 : i32, i32
  }
  func.func @transform_5(%arg0: i32) -> (i32, i32) {
    %c0_i32 = arith.constant 0 : i32
    %c0_i32_0 = arith.constant 0 : i32
    %c0_i32_1 = arith.constant 0 : i32
    return %c0_i32, %c0_i32_0 : i32, i32
  }
  func.func @transform_6(%arg0: i32) -> (i32, i32) {
    %c0_i32 = arith.constant 0 : i32
    %c0_i32_0 = arith.constant 0 : i32
    %c0_i32_1 = arith.constant 0 : i32
    return %c0_i32, %c0_i32_0 : i32, i32
  }
  func.func @transform_7(%arg0: i32) -> (i32, i32) {
    %c0_i32 = arith.constant 0 : i32
    %c0_i32_0 = arith.constant 0 : i32
    return %arg0, %c0_i32 : i32, i32
  }
}

</mosaic_0001>

<llo_original>
// kernel: tpu_custom_call.1
$region0: #{tpu_custom_call.1}
  #allocation0 [shape = 'u32[]', space=smem, size = 0x4, offset = 0x4, fixed_abs, tag = 'smem constant byte address 0x4 - core index']
  #allocation1 [shape = 'u32[144,128]{1,0:T(1,128)}', space=vmem, size = 0x12000, scoped, tag = 'internal scratch']
  %s0 = inlined_call_operand.vmem [shape: f32[2,128], index: 0, kind: input, shape index: {}]
  %s1 = inlined_call_operand.vmem [shape: f32[128,128], index: 1, kind: input, shape index: {}]
  %s2 = inlined_call_operand.vmem [shape: f32[1,128], index: 2, kind: input, shape index: {}]
  %s3 = inlined_call_operand.vmem [shape: f32[128,64], index: 3, kind: input, shape index: {}]
  %s4 = inlined_call_operand.vmem [shape: f32[1,64], index: 4, kind: input, shape index: {}]
  %s5 = inlined_call_operand.vmem [shape: f32[64,16], index: 5, kind: input, shape index: {}]
  %s6 = inlined_call_operand.vmem [shape: f32[1,16], index: 6, kind: input, shape index: {}]
  %s7 = inlined_call_operand.hbm [shape: f32[2,16], index: 7, kind: output, shape index: {}]
  %s8 = sld [smem:[#allocation0]]
  $region38: #{tpu_custom_call.1} parent=0
    _
  %s10 = ssub.s32 1, %s8
  %s11 = scalar_select 0, %s10, %s8
  $region1: #{tpu_custom_call.1} parent=0
    #allocation2 [shape = 'u8[1024]{0}', space=vmem, size = 0x400, scoped, tag = 'output window, operand 0, single buffered']
    #allocation3 [shape = 's32[1]{0}', space=sflag, size = 0x4, scoped, tag = 'scoped memory for tpu_custom_call.1']
    %12 = vsyncpa [#allocation3], 0
    // Predicated region
    $region2: #{tpu_custom_call.1} parent=1 // pred_check
      _
    $region3: #{tpu_custom_call.1} parent=1 // pred_check_branch
      %14 = sbr.rel (0) target = $region5
    $region4: #{tpu_custom_call.1} parent=1 // pred_region
      _
    $region5: #{tpu_custom_call.1} parent=1 // pred_fallthru
      _
    // Predicated region
    $region6: #{tpu_custom_call.1} parent=1 // pred_check
      _
    $region7: #{tpu_custom_call.1} parent=1 // pred_check_branch
      %16 = sbr.rel (0) target = $region9
    $region8: #{tpu_custom_call.1} parent=1 // pred_region
      _
    $region9: #{tpu_custom_call.1} parent=1 // pred_fallthru
      _
    // Predicated region
    $region10: #{tpu_custom_call.1} parent=1 // pred_check
      _
    $region11: #{tpu_custom_call.1} parent=1 // pred_check_branch
      %18 = sbr.rel (0) target = $region13
    $region12: #{tpu_custom_call.1} parent=1 // pred_region
      _
    $region13: #{tpu_custom_call.1} parent=1 // pred_fallthru
      _
    // Predicated region
    $region14: #{tpu_custom_call.1} parent=1 // pred_check
      _
    $region15: #{tpu_custom_call.1} parent=1 // pred_check_branch
      %20 = sbr.rel (0) target = $region17
    $region16: #{tpu_custom_call.1} parent=1 // pred_region
      _
    $region17: #{tpu_custom_call.1} parent=1 // pred_fallthru
      _
    // Predicated region
    $region18: #{tpu_custom_call.1} parent=1 // pred_check
      _
    $region19: #{tpu_custom_call.1} parent=1 // pred_check_branch
      %22 = sbr.rel (0) target = $region21
    $region20: #{tpu_custom_call.1} parent=1 // pred_region
      _
    $region21: #{tpu_custom_call.1} parent=1 // pred_fallthru
      _
    // Predicated region
    $region22: #{tpu_custom_call.1} parent=1 // pred_check
      _
    $region23: #{tpu_custom_call.1} parent=1 // pred_check_branch
      %24 = sbr.rel (0) target = $region25
    $region24: #{tpu_custom_call.1} parent=1 // pred_region
      _
    $region25: #{tpu_custom_call.1} parent=1 // pred_fallthru
      _
    // Predicated region
    $region26: #{tpu_custom_call.1} parent=1 // pred_check
      _
    $region27: #{tpu_custom_call.1} parent=1 // pred_check_branch
      %26 = sbr.rel (0) target = $region29
    $region28: #{tpu_custom_call.1} parent=1 // pred_region
      _
    $region29: #{tpu_custom_call.1} parent=1 // pred_fallthru
      _
    %v27 = vld [vmem:[%s0] sm:$0x3]
    %v28 = vld [vmem:[%s1] sm:$0xff]
    %v29 = vld [vmem:[%s1 + $0x8] sm:$0xff]
    %v30 = vld [vmem:[%s1 + $0x10] sm:$0xff]
    %v31 = vld [vmem:[%s1 + $0x18] sm:$0xff]
    %v32 = vld [vmem:[%s1 + $0x20] sm:$0xff]
    %v33 = vld [vmem:[%s1 + $0x28] sm:$0xff]
    %v34 = vld [vmem:[%s1 + $0x30] sm:$0xff]
    %v35 = vld [vmem:[%s1 + $0x38] sm:$0xff]
    %v36 = vld [vmem:[%s1 + $0x40] sm:$0xff]
    %v37 = vld [vmem:[%s1 + $0x48] sm:$0xff]
    %v38 = vld [vmem:[%s1 + $0x50] sm:$0xff]
    %v39 = vld [vmem:[%s1 + $0x58] sm:$0xff]
    %v40 = vld [vmem:[%s1 + $0x60] sm:$0xff]
    %v41 = vld [vmem:[%s1 + $0x68] sm:$0xff]
    %v42 = vld [vmem:[%s1 + $0x70] sm:$0xff]
    %v43 = vld [vmem:[%s1 + $0x78] sm:$0xff]
    %v44 = vld [vmem:[%s2] sm:$0x1]
    %v46 = vlaneseq
    %v47 = vshrl.u32 %v46, 7
    %v48 = vsub.s32 0, %v47
    %v49 = vrot.slane %v44, %v48
    %51 = vmatprep.subr.mxu0 0.0
    %52 = vmatpush1.msra.mxu0 %v43
    %53 = vmatprep.subr.mxu0 0.0
    %54 = vmatpush1.msra.mxu0 %v42
    %55 = vmatprep.subr.mxu0 0.0
    %56 = vmatpush1.msra.mxu0 %v41
    %57 = vmatprep.subr.mxu0 0.0
    %58 = vmatpush1.msra.mxu0 %v40
    %59 = vmatprep.subr.mxu0 0.0
    %60 = vmatpush1.msra.mxu0 %v39
    %61 = vmatprep.subr.mxu0 0.0
    %62 = vmatpush1.msra.mxu0 %v38
    %63 = vmatprep.subr.mxu0 0.0
    %64 = vmatpush1.msra.mxu0 %v37
    %65 = vmatprep.subr.mxu0 0.0
    %66 = vmatpush1.msra.mxu0 %v36
    %67 = vmatprep.subr.mxu0 0.0
    %68 = vmatpush1.msra.mxu0 %v35
    %69 = vmatprep.subr.mxu0 0.0
    %70 = vmatpush1.msra.mxu0 %v34
    %71 = vmatprep.subr.mxu0 0.0
    %72 = vmatpush1.msra.mxu0 %v33
    %73 = vmatprep.subr.mxu0 0.0
    %74 = vmatpush1.msra.mxu0 %v32
    %75 = vmatprep.subr.mxu0 0.0
    %76 = vmatpush1.msra.mxu0 %v31
    %77 = vmatprep.subr.mxu0 0.0
    %78 = vmatpush1.msra.mxu0 %v30
    %79 = vmatprep.subr.mxu0 0.0
    %80 = vmatpush1.msra.mxu0 %v29
    %81 = vmatprep.subr.mxu0 0.0
    %82 = vmatpush1.msra.mxu0 %v28
    %83 = vmatprep.subr.mxu0 0.0
    %84 = vmatpush2.msra.mxu0 0.0
    %85 = vmatprep.subr.mxu0 0.0
    %86 = vmatpush2.msra.mxu0 0.0
    %87 = vmatprep.subr.mxu0 0.0
    %88 = vmatpush2.msra.mxu0 0.0
    %89 = vmatprep.subr.mxu0 0.0
    %90 = vmatpush2.msra.mxu0 0.0
    %91 = vmatprep.subr.mxu0 0.0
    %92 = vmatpush2.msra.mxu0 0.0
    %93 = vmatprep.subr.mxu0 0.0
    %94 = vmatpush2.msra.mxu0 0.0
    %95 = vmatprep.subr.mxu0 0.0
    %96 = vmatpush2.msra.mxu0 0.0
    %97 = vmatprep.subr.mxu0 0.0
    %98 = vmatpush2.msra.mxu0 0.0
    %99 = vmatprep.subr.mxu0 0.0
    %100 = vmatpush2.msra.mxu0 0.0
    %101 = vmatprep.subr.mxu0 0.0
    %102 = vmatpush2.msra.mxu0 0.0
    %103 = vmatprep.subr.mxu0 0.0
    %104 = vmatpush2.msra.mxu0 0.0
    %105 = vmatprep.subr.mxu0 0.0
    %106 = vmatpush2.msra.mxu0 0.0
    %107 = vmatprep.subr.mxu0 0.0
    %108 = vmatpush2.msra.mxu0 0.0
    %109 = vmatprep.subr.mxu0 0.0
    %110 = vmatpush2.msra.mxu0 0.0
    %111 = vmatprep.subr.mxu0 0.0
    %112 = vmatpush2.msra.mxu0 0.0
    %113 = vmatprep.subr.mxu0 0.0
    %114 = vmatpush2.msra.mxu0 0.0
    %115 = vmatprep.mubr.f32.mxu0 0.0
    %116 = vmatmul.mubr.f32.gmra.mxu0 %v27
    %v117 = vpop.f32.mrf.mxu0
    %v118 = vadd.f32 %v49, %v117
    %v119 = vpop.f32.mrf.mxu0
    %120 = vdwg.mxu0
    %v121 = vmax.f32 %v118, 0.0
    %v122 = vld [vmem:[%s3] sm:$0xff]
    %v123 = vld [vmem:[%s3 + $0x8] sm:$0xff]
    %v124 = vld [vmem:[%s3 + $0x10] sm:$0xff]
    %v125 = vld [vmem:[%s3 + $0x18] sm:$0xff]
    %v126 = vld [vmem:[%s3 + $0x20] sm:$0xff]
    %v127 = vld [vmem:[%s3 + $0x28] sm:$0xff]
    %v128 = vld [vmem:[%s3 + $0x30] sm:$0xff]
    %v129 = vld [vmem:[%s3 + $0x38] sm:$0xff]
    %v130 = vld [vmem:[%s3 + $0x40] sm:$0xff]
    %v131 = vld [vmem:[%s3 + $0x48] sm:$0xff]
    %v132 = vld [vmem:[%s3 + $0x50] sm:$0xff]
    %v133 = vld [vmem:[%s3 + $0x58] sm:$0xff]
    %v134 = vld [vmem:[%s3 + $0x60] sm:$0xff]
    %v135 = vld [vmem:[%s3 + $0x68] sm:$0xff]
    %v136 = vld [vmem:[%s3 + $0x70] sm:$0xff]
    %v137 = vld [vmem:[%s3 + $0x78] sm:$0xff]
    %v138 = vld [vmem:[%s4] sm:$0x1]
    %v140 = vlaneseq
    %v141 = vshrl.u32 %v140, 7
    %v142 = vsub.s32 0, %v141
    %v143 = vrot.slane %v138, %v142
    %145 = vmatprep.subr.mxu0 0.0
    %146 = vmatpush1.msra.mxu0 %v137
    %147 = vmatprep.subr.mxu0 0.0
    %148 = vmatpush1.msra.mxu0 %v136
    %149 = vmatprep.subr.mxu0 0.0
    %150 = vmatpush1.msra.mxu0 %v135
    %151 = vmatprep.subr.mxu0 0.0
    %152 = vmatpush1.msra.mxu0 %v134
    %153 = vmatprep.subr.mxu0 0.0
    %154 = vmatpush1.msra.mxu0 %v133
    %155 = vmatprep.subr.mxu0 0.0
    %156 = vmatpush1.msra.mxu0 %v132
    %157 = vmatprep.subr.mxu0 0.0
    %158 = vmatpush1.msra.mxu0 %v131
    %159 = vmatprep.subr.mxu0 0.0
    %160 = vmatpush1.msra.mxu0 %v130
    %161 = vmatprep.subr.mxu0 0.0
    %162 = vmatpush1.msra.mxu0 %v129
    %163 = vmatprep.subr.mxu0 0.0
    %164 = vmatpush1.msra.mxu0 %v128
    %165 = vmatprep.subr.mxu0 0.0
    %166 = vmatpush1.msra.mxu0 %v127
    %167 = vmatprep.subr.mxu0 0.0
    %168 = vmatpush1.msra.mxu0 %v126
    %169 = vmatprep.subr.mxu0 0.0
    %170 = vmatpush1.msra.mxu0 %v125
    %171 = vmatprep.subr.mxu0 0.0
    %172 = vmatpush1.msra.mxu0 %v124
    %173 = vmatprep.subr.mxu0 0.0
    %174 = vmatpush1.msra.mxu0 %v123
    %175 = vmatprep.subr.mxu0 0.0
    %176 = vmatpush1.msra.mxu0 %v122
    %177 = vmatprep.subr.mxu0 0.0
    %178 = vmatpush2.msra.mxu0 0.0
    %179 = vmatprep.subr.mxu0 0.0
    %180 = vmatpush2.msra.mxu0 0.0
    %181 = vmatprep.subr.mxu0 0.0
    %182 = vmatpush2.msra.mxu0 0.0
    %183 = vmatprep.subr.mxu0 0.0
    %184 = vmatpush2.msra.mxu0 0.0
    %185 = vmatprep.subr.mxu0 0.0
    %186 = vmatpush2.msra.mxu0 0.0
    %187 = vmatprep.subr.mxu0 0.0
    %188 = vmatpush2.msra.mxu0 0.0
    %189 = vmatprep.subr.mxu0 0.0
    %190 = vmatpush2.msra.mxu0 0.0
    %191 = vmatprep.subr.mxu0 0.0
    %192 = vmatpush2.msra.mxu0 0.0
    %193 = vmatprep.subr.mxu0 0.0
    %194 = vmatpush2.msra.mxu0 0.0
    %195 = vmatprep.subr.mxu0 0.0
    %196 = vmatpush2.msra.mxu0 0.0
    %197 = vmatprep.subr.mxu0 0.0
    %198 = vmatpush2.msra.mxu0 0.0
    %199 = vmatprep.subr.mxu0 0.0
    %200 = vmatpush2.msra.mxu0 0.0
    %201 = vmatprep.subr.mxu0 0.0
    %202 = vmatpush2.msra.mxu0 0.0
    %203 = vmatprep.subr.mxu0 0.0
    %204 = vmatpush2.msra.mxu0 0.0
    %205 = vmatprep.subr.mxu0 0.0
    %206 = vmatpush2.msra.mxu0 0.0
    %207 = vmatprep.subr.mxu0 0.0
    %208 = vmatpush2.msra.mxu0 0.0
    %209 = vmatprep.mubr.f32.mxu0 0.0
    %210 = vmatmul.mubr.f32.gmra.mxu0 %v121
    %v211 = vpop.f32.mrf.mxu0
    %v212 = vadd.f32 %v143, %v211
    %v213 = vpop.f32.mrf.mxu0
    %214 = vdwg.mxu0
    %v215 = vmax.f32 %v212, 0.0
    %v216 = vld [vmem:[%s5] sm:$0xff]
    %v217 = vld [vmem:[%s5 + $0x8] sm:$0xff]
    %v218 = vld [vmem:[%s5 + $0x10] sm:$0xff]
    %v219 = vld [vmem:[%s5 + $0x18] sm:$0xff]
    %v220 = vld [vmem:[%s5 + $0x20] sm:$0xff]
    %v221 = vld [vmem:[%s5 + $0x28] sm:$0xff]
    %v222 = vld [vmem:[%s5 + $0x30] sm:$0xff]
    %v223 = vld [vmem:[%s5 + $0x38] sm:$0xff]
    %v224 = vld [vmem:[%s6] sm:$0x1]
    %v226 = vlaneseq
    %v227 = vshrl.u32 %v226, 7
    %v228 = vsub.s32 0, %v227
    %v229 = vrot.slane %v224, %v228
    %vm231 = vcmask 523264
    %v233 = vsel %vm231, %v215, 0
    %235 = vmatprep.subr.mxu0 0.0
    %236 = vmatpush1.msra.mxu0 0.0
    %237 = vmatprep.subr.mxu0 0.0
    %238 = vmatpush1.msra.mxu0 0.0
    %239 = vmatprep.subr.mxu0 0.0
    %240 = vmatpush1.msra.mxu0 0.0
    %241 = vmatprep.subr.mxu0 0.0
    %242 = vmatpush1.msra.mxu0 0.0
    %243 = vmatprep.subr.mxu0 0.0
    %244 = vmatpush1.msra.mxu0 0.0
    %245 = vmatprep.subr.mxu0 0.0
    %246 = vmatpush1.msra.mxu0 0.0
    %247 = vmatprep.subr.mxu0 0.0
    %248 = vmatpush1.msra.mxu0 0.0
    %249 = vmatprep.subr.mxu0 0.0
    %250 = vmatpush1.msra.mxu0 0.0
    %251 = vmatprep.subr.mxu0 0.0
    %252 = vmatpush1.msra.mxu0 %v223
    %253 = vmatprep.subr.mxu0 0.0
    %254 = vmatpush1.msra.mxu0 %v222
    %255 = vmatprep.subr.mxu0 0.0
    %256 = vmatpush1.msra.mxu0 %v221
    %257 = vmatprep.subr.mxu0 0.0
    %258 = vmatpush1.msra.mxu0 %v220
    %259 = vmatprep.subr.mxu0 0.0
    %260 = vmatpush1.msra.mxu0 %v219
    %261 = vmatprep.subr.mxu0 0.0
    %262 = vmatpush1.msra.mxu0 %v218
    %263 = vmatprep.subr.mxu0 0.0
    %264 = vmatpush1.msra.mxu0 %v217
    %265 = vmatprep.subr.mxu0 0.0
    %266 = vmatpush1.msra.mxu0 %v216
    %267 = vmatprep.subr.mxu0 0.0
    %268 = vmatpush2.msra.mxu0 0.0
    %269 = vmatprep.subr.mxu0 0.0
    %270 = vmatpush2.msra.mxu0 0.0
    %271 = vmatprep.subr.mxu0 0.0
    %272 = vmatpush2.msra.mxu0 0.0
    %273 = vmatprep.subr.mxu0 0.0
    %274 = vmatpush2.msra.mxu0 0.0
    %275 = vmatprep.subr.mxu0 0.0
    %276 = vmatpush2.msra.mxu0 0.0
    %277 = vmatprep.subr.mxu0 0.0
    %278 = vmatpush2.msra.mxu0 0.0
    %279 = vmatprep.subr.mxu0 0.0
    %280 = vmatpush2.msra.mxu0 0.0
    %281 = vmatprep.subr.mxu0 0.0
    %282 = vmatpush2.msra.mxu0 0.0
    %283 = vmatprep.subr.mxu0 0.0
    %284 = vmatpush2.msra.mxu0 0.0
    %285 = vmatprep.subr.mxu0 0.0
    %286 = vmatpush2.msra.mxu0 0.0
    %287 = vmatprep.subr.mxu0 0.0
    %288 = vmatpush2.msra.mxu0 0.0
    %289 = vmatprep.subr.mxu0 0.0
    %290 = vmatpush2.msra.mxu0 0.0
    %291 = vmatprep.subr.mxu0 0.0
    %292 = vmatpush2.msra.mxu0 0.0
    %293 = vmatprep.subr.mxu0 0.0
    %294 = vmatpush2.msra.mxu0 0.0
    %295 = vmatprep.subr.mxu0 0.0
    %296 = vmatpush2.msra.mxu0 0.0
    %297 = vmatprep.subr.mxu0 0.0
    %298 = vmatpush2.msra.mxu0 0.0
    %299 = vmatprep.mubr.f32.mxu0 0.0
    %300 = vmatmul.mubr.f32.gmra.mxu0 %v233
    %v301 = vpop.f32.mrf.mxu0
    %v302 = vadd.f32 %v229, %v301
    %v303 = vpop.f32.mrf.mxu0
    %304 = vdwg.mxu0
    %vm305 = vcmask 123904
    %306 = vst.msk [vmem:[#allocation2] sm:$0x3] %vm305, %v302
    // Predicated region
    $region30: #{tpu_custom_call.1} parent=1 // pred_check
      _
    $region31: #{tpu_custom_call.1} parent=1 // pred_check_branch
      %308 = sbr.rel (0) target = $region33
    $region32: #{tpu_custom_call.1} parent=1 // pred_region
      %s310 = ssub.s32 32, 32
      %311 = vsyncadd [#allocation3], %s310
      %s313 = sshll.u32 [#allocation2], 4
      %s314 = int_to_ptr.vmem [resolvable:$true] %s313
      %316 = dma.vmem_to_hbm [thread:$0]  %s314, 32, %s7, [#allocation3]
    $region33: #{tpu_custom_call.1} parent=1 // pred_fallthru
      _
    // Predicated region
    $region34: #{tpu_custom_call.1} parent=1 // pred_check
      _
    $region35: #{tpu_custom_call.1} parent=1 // pred_check_branch
      %318 = sbr.rel (0) target = $region37
    $region36: #{tpu_custom_call.1} parent=1 // pred_region
      %319 = dma.done [#allocation3], 32
    $region37: #{tpu_custom_call.1} parent=1 // pred_fallthru
      _
    %320 = vsyncpa [#allocation3], 1

// kernel: tpu_custom_call.1
$region0: #{tpu_custom_call.1}
  #allocation0 [shape = 'u32[]', space=smem, size = 0x4, offset = 0x4, fixed_abs, tag = 'smem constant byte address 0x4 - core index']
  #allocation1 [shape = 'u32[144,128]{1,0:T(1,128)}', space=vmem, size = 0x12000, scoped, tag = 'internal scratch']
  %s0 = inlined_call_operand.vmem [shape: f32[2,128], index: 0, kind: input, shape index: {}]
  %s1 = inlined_call_operand.vmem [shape: f32[128,128], index: 1, kind: input, shape index: {}]
  %s2 = inlined_call_operand.vmem [shape: f32[1,128], index: 2, kind: input, shape index: {}]
  %s3 = inlined_call_operand.vmem [shape: f32[128,64], index: 3, kind: input, shape index: {}]
  %s4 = inlined_call_operand.vmem [shape: f32[1,64], index: 4, kind: input, shape index: {}]
  %s5 = inlined_call_operand.vmem [shape: f32[64,16], index: 5, kind: input, shape index: {}]
  %s6 = inlined_call_operand.vmem [shape: f32[1,16], index: 6, kind: input, shape index: {}]
  %s7 = inlined_call_operand.hbm [shape: f32[2,16], index: 7, kind: output, shape index: {}]
  %s8 = sld [smem:[#allocation0]]
  $region38: #{tpu_custom_call.1} parent=0
    _
  %s10 = ssub.s32 1, %s8
  %s11 = scalar_select 0, %s10, %s8
  $region1: #{tpu_custom_call.1} parent=0
    #allocation2 [shape = 'u8[1024]{0}', space=vmem, size = 0x400, scoped, tag = 'output window, operand 0, single buffered']
    #allocation3 [shape = 's32[1]{0}', space=sflag, size = 0x4, scoped, tag = 'scoped memory for tpu_custom_call.1']
    %12 = vsyncpa [#allocation3], 0
    // Predicated region
    $region2: #{tpu_custom_call.1} parent=1 // pred_check
      _
    $region3: #{tpu_custom_call.1} parent=1 // pred_check_branch
      %14 = sbr.rel (0) target = $region5
    $region4: #{tpu_custom_call.1} parent=1 // pred_region
      _
    $region5: #{tpu_custom_call.1} parent=1 // pred_fallthru
      _
    // Predicated region
    $region6: #{tpu_custom_call.1} parent=1 // pred_check
      _
    $region7: #{tpu_custom_call.1} parent=1 // pred_check_branch
      %16 = sbr.rel (0) target = $region9
    $region8: #{tpu_custom_call.1} parent=1 // pred_region
      _
    $region9: #{tpu_custom_call.1} parent=1 // pred_fallthru
      _
    // Predicated region
    $region10: #{tpu_custom_call.1} parent=1 // pred_check
      _
    $region11: #{tpu_custom_call.1} parent=1 // pred_check_branch
      %18 = sbr.rel (0) target = $region13
    $region12: #{tpu_custom_call.1} parent=1 // pred_region
      _
    $region13: #{tpu_custom_call.1} parent=1 // pred_fallthru
      _
    // Predicated region
    $region14: #{tpu_custom_call.1} parent=1 // pred_check
      _
    $region15: #{tpu_custom_call.1} parent=1 // pred_check_branch
      %20 = sbr.rel (0) target = $region17
    $region16: #{tpu_custom_call.1} parent=1 // pred_region
      _
    $region17: #{tpu_custom_call.1} parent=1 // pred_fallthru
      _
    // Predicated region
    $region18: #{tpu_custom_call.1} parent=1 // pred_check
      _
    $region19: #{tpu_custom_call.1} parent=1 // pred_check_branch
      %22 = sbr.rel (0) target = $region21
    $region20: #{tpu_custom_call.1} parent=1 // pred_region
      _
    $region21: #{tpu_custom_call.1} parent=1 // pred_fallthru
      _
    // Predicated region
    $region22: #{tpu_custom_call.1} parent=1 // pred_check
      _
    $region23: #{tpu_custom_call.1} parent=1 // pred_check_branch
      %24 = sbr.rel (0) target = $region25
    $region24: #{tpu_custom_call.1} parent=1 // pred_region
      _
    $region25: #{tpu_custom_call.1} parent=1 // pred_fallthru
      _
    // Predicated region
    $region26: #{tpu_custom_call.1} parent=1 // pred_check
      _
    $region27: #{tpu_custom_call.1} parent=1 // pred_check_branch
      %26 = sbr.rel (0) target = $region29
    $region28: #{tpu_custom_call.1} parent=1 // pred_region
      _
    $region29: #{tpu_custom_call.1} parent=1 // pred_fallthru
      _
    %v27 = vld [vmem:[%s0] sm:$0x3]
    %v28 = vld [vmem:[%s1] sm:$0xff]
    %v29 = vld [vmem:[%s1 + $0x8] sm:$0xff]
    %v30 = vld [vmem:[%s1 + $0x10] sm:$0xff]
    %v31 = vld [vmem:[%s1 + $0x18] sm:$0xff]
    %v32 = vld [vmem:[%s1 + $0x20] sm:$0xff]
    %v33 = vld [vmem:[%s1 + $0x28] sm:$0xff]
    %v34 = vld [vmem:[%s1 + $0x30] sm:$0xff]
    %v35 = vld [vmem:[%s1 + $0x38] sm:$0xff]
    %v36 = vld [vmem:[%s1 + $0x40] sm:$0xff]
    %v37 = vld [vmem:[%s1 + $0x48] sm:$0xff]
    %v38 = vld [vmem:[%s1 + $0x50] sm:$0xff]
    %v39 = vld [vmem:[%s1 + $0x58] sm:$0xff]
    %v40 = vld [vmem:[%s1 + $0x60] sm:$0xff]
    %v41 = vld [vmem:[%s1 + $0x68] sm:$0xff]
    %v42 = vld [vmem:[%s1 + $0x70] sm:$0xff]
    %v43 = vld [vmem:[%s1 + $0x78] sm:$0xff]
    %v44 = vld [vmem:[%s2] sm:$0x1]
    %v46 = vlaneseq
    %v47 = vshrl.u32 %v46, 7
    %v48 = vsub.s32 0, %v47
    %v49 = vrot.slane %v44, %v48
    %51 = vmatprep.subr.mxu0 0.0
    %52 = vmatpush1.msra.mxu0 %v43
    %53 = vmatprep.subr.mxu0 0.0
    %54 = vmatpush1.msra.mxu0 %v42
    %55 = vmatprep.subr.mxu0 0.0
    %56 = vmatpush1.msra.mxu0 %v41
    %57 = vmatprep.subr.mxu0 0.0
    %58 = vmatpush1.msra.mxu0 %v40
    %59 = vmatprep.subr.mxu0 0.0
    %60 = vmatpush1.msra.mxu0 %v39
    %61 = vmatprep.subr.mxu0 0.0
    %62 = vmatpush1.msra.mxu0 %v38
    %63 = vmatprep.subr.mxu0 0.0
    %64 = vmatpush1.msra.mxu0 %v37
    %65 = vmatprep.subr.mxu0 0.0
    %66 = vmatpush1.msra.mxu0 %v36
    %67 = vmatprep.subr.mxu0 0.0
    %68 = vmatpush1.msra.mxu0 %v35
    %69 = vmatprep.subr.mxu0 0.0
    %70 = vmatpush1.msra.mxu0 %v34
    %71 = vmatprep.subr.mxu0 0.0
    %72 = vmatpush1.msra.mxu0 %v33
    %73 = vmatprep.subr.mxu0 0.0
    %74 = vmatpush1.msra.mxu0 %v32
    %75 = vmatprep.subr.mxu0 0.0
    %76 = vmatpush1.msra.mxu0 %v31
    %77 = vmatprep.subr.mxu0 0.0
    %78 = vmatpush1.msra.mxu0 %v30
    %79 = vmatprep.subr.mxu0 0.0
    %80 = vmatpush1.msra.mxu0 %v29
    %81 = vmatprep.subr.mxu0 0.0
    %82 = vmatpush1.msra.mxu0 %v28
    %83 = vmatprep.subr.mxu0 0.0
    %84 = vmatpush2.msra.mxu0 0.0
    %85 = vmatprep.subr.mxu0 0.0
    %86 = vmatpush2.msra.mxu0 0.0
    %87 = vmatprep.subr.mxu0 0.0
    %88 = vmatpush2.msra.mxu0 0.0
    %89 = vmatprep.subr.mxu0 0.0
    %90 = vmatpush2.msra.mxu0 0.0
    %91 = vmatprep.subr.mxu0 0.0
    %92 = vmatpush2.msra.mxu0 0.0
    %93 = vmatprep.subr.mxu0 0.0
    %94 = vmatpush2.msra.mxu0 0.0
    %95 = vmatprep.subr.mxu0 0.0
    %96 = vmatpush2.msra.mxu0 0.0
    %97 = vmatprep.subr.mxu0 0.0
    %98 = vmatpush2.msra.mxu0 0.0
    %99 = vmatprep.subr.mxu0 0.0
    %100 = vmatpush2.msra.mxu0 0.0
    %101 = vmatprep.subr.mxu0 0.0
    %102 = vmatpush2.msra.mxu0 0.0
    %103 = vmatprep.subr.mxu0 0.0
    %104 = vmatpush2.msra.mxu0 0.0
    %105 = vmatprep.subr.mxu0 0.0
    %106 = vmatpush2.msra.mxu0 0.0
    %107 = vmatprep.subr.mxu0 0.0
    %108 = vmatpush2.msra.mxu0 0.0
    %109 = vmatprep.subr.mxu0 0.0
    %110 = vmatpush2.msra.mxu0 0.0
    %111 = vmatprep.subr.mxu0 0.0
    %112 = vmatpush2.msra.mxu0 0.0
    %113 = vmatprep.subr.mxu0 0.0
    %114 = vmatpush2.msra.mxu0 0.0
    %115 = vmatprep.mubr.f32.mxu0 0.0
    %116 = vmatmul.mubr.f32.gmra.mxu0 %v27
    %v117 = vpop.f32.mrf.mxu0
    %v118 = vadd.f32 %v49, %v117
    %v119 = vpop.f32.mrf.mxu0
    %120 = vdwg.mxu0
    %v121 = vmax.f32 %v118, 0.0
    %v122 = vld [vmem:[%s3] sm:$0xff]
    %v123 = vld [vmem:[%s3 + $0x8] sm:$0xff]
    %v124 = vld [vmem:[%s3 + $0x10] sm:$0xff]
    %v125 = vld [vmem:[%s3 + $0x18] sm:$0xff]
    %v126 = vld [vmem:[%s3 + $0x20] sm:$0xff]
    %v127 = vld [vmem:[%s3 + $0x28] sm:$0xff]
    %v128 = vld [vmem:[%s3 + $0x30] sm:$0xff]
    %v129 = vld [vmem:[%s3 + $0x38] sm:$0xff]
    %v130 = vld [vmem:[%s3 + $0x40] sm:$0xff]
    %v131 = vld [vmem:[%s3 + $0x48] sm:$0xff]
    %v132 = vld [vmem:[%s3 + $0x50] sm:$0xff]
    %v133 = vld [vmem:[%s3 + $0x58] sm:$0xff]
    %v134 = vld [vmem:[%s3 + $0x60] sm:$0xff]
    %v135 = vld [vmem:[%s3 + $0x68] sm:$0xff]
    %v136 = vld [vmem:[%s3 + $0x70] sm:$0xff]
    %v137 = vld [vmem:[%s3 + $0x78] sm:$0xff]
    %v138 = vld [vmem:[%s4] sm:$0x1]
    %v140 = vlaneseq
    %v141 = vshrl.u32 %v140, 7
    %v142 = vsub.s32 0, %v141
    %v143 = vrot.slane %v138, %v142
    %145 = vmatprep.subr.mxu0 0.0
    %146 = vmatpush1.msra.mxu0 %v137
    %147 = vmatprep.subr.mxu0 0.0
    %148 = vmatpush1.msra.mxu0 %v136
    %149 = vmatprep.subr.mxu0 0.0
    %150 = vmatpush1.msra.mxu0 %v135
    %151 = vmatprep.subr.mxu0 0.0
    %152 = vmatpush1.msra.mxu0 %v134
    %153 = vmatprep.subr.mxu0 0.0
    %154 = vmatpush1.msra.mxu0 %v133
    %155 = vmatprep.subr.mxu0 0.0
    %156 = vmatpush1.msra.mxu0 %v132
    %157 = vmatprep.subr.mxu0 0.0
    %158 = vmatpush1.msra.mxu0 %v131
    %159 = vmatprep.subr.mxu0 0.0
    %160 = vmatpush1.msra.mxu0 %v130
    %161 = vmatprep.subr.mxu0 0.0
    %162 = vmatpush1.msra.mxu0 %v129
    %163 = vmatprep.subr.mxu0 0.0
    %164 = vmatpush1.msra.mxu0 %v128
    %165 = vmatprep.subr.mxu0 0.0
    %166 = vmatpush1.msra.mxu0 %v127
    %167 = vmatprep.subr.mxu0 0.0
    %168 = vmatpush1.msra.mxu0 %v126
    %169 = vmatprep.subr.mxu0 0.0
    %170 = vmatpush1.msra.mxu0 %v125
    %171 = vmatprep.subr.mxu0 0.0
    %172 = vmatpush1.msra.mxu0 %v124
    %173 = vmatprep.subr.mxu0 0.0
    %174 = vmatpush1.msra.mxu0 %v123
    %175 = vmatprep.subr.mxu0 0.0
    %176 = vmatpush1.msra.mxu0 %v122
    %177 = vmatprep.subr.mxu0 0.0
    %178 = vmatpush2.msra.mxu0 0.0
    %179 = vmatprep.subr.mxu0 0.0
    %180 = vmatpush2.msra.mxu0 0.0
    %181 = vmatprep.subr.mxu0 0.0
    %182 = vmatpush2.msra.mxu0 0.0
    %183 = vmatprep.subr.mxu0 0.0
    %184 = vmatpush2.msra.mxu0 0.0
    %185 = vmatprep.subr.mxu0 0.0
    %186 = vmatpush2.msra.mxu0 0.0
    %187 = vmatprep.subr.mxu0 0.0
    %188 = vmatpush2.msra.mxu0 0.0
    %189 = vmatprep.subr.mxu0 0.0
    %190 = vmatpush2.msra.mxu0 0.0
    %191 = vmatprep.subr.mxu0 0.0
    %192 = vmatpush2.msra.mxu0 0.0
    %193 = vmatprep.subr.mxu0 0.0
    %194 = vmatpush2.msra.mxu0 0.0
    %195 = vmatprep.subr.mxu0 0.0
    %196 = vmatpush2.msra.mxu0 0.0
    %197 = vmatprep.subr.mxu0 0.0
    %198 = vmatpush2.msra.mxu0 0.0
    %199 = vmatprep.subr.mxu0 0.0
    %200 = vmatpush2.msra.mxu0 0.0
    %201 = vmatprep.subr.mxu0 0.0
    %202 = vmatpush2.msra.mxu0 0.0
    %203 = vmatprep.subr.mxu0 0.0
    %204 = vmatpush2.msra.mxu0 0.0
    %205 = vmatprep.subr.mxu0 0.0
    %206 = vmatpush2.msra.mxu0 0.0
    %207 = vmatprep.subr.mxu0 0.0
    %208 = vmatpush2.msra.mxu0 0.0
    %209 = vmatprep.mubr.f32.mxu0 0.0
    %210 = vmatmul.mubr.f32.gmra.mxu0 %v121
    %v211 = vpop.f32.mrf.mxu0
    %v212 = vadd.f32 %v143, %v211
    %v213 = vpop.f32.mrf.mxu0
    %214 = vdwg.mxu0
    %v215 = vmax.f32 %v212, 0.0
    %v216 = vld [vmem:[%s5] sm:$0xff]
    %v217 = vld [vmem:[%s5 + $0x8] sm:$0xff]
    %v218 = vld [vmem:[%s5 + $0x10] sm:$0xff]
    %v219 = vld [vmem:[%s5 + $0x18] sm:$0xff]
    %v220 = vld [vmem:[%s5 + $0x20] sm:$0xff]
    %v221 = vld [vmem:[%s5 + $0x28] sm:$0xff]
    %v222 = vld [vmem:[%s5 + $0x30] sm:$0xff]
    %v223 = vld [vmem:[%s5 + $0x38] sm:$0xff]
    %v224 = vld [vmem:[%s6] sm:$0x1]
    %v226 = vlaneseq
    %v227 = vshrl.u32 %v226, 7
    %v228 = vsub.s32 0, %v227
    %v229 = vrot.slane %v224, %v228
    %vm231 = vcmask 523264
    %v233 = vsel %vm231, %v215, 0
    %235 = vmatprep.subr.mxu0 0.0
    %236 = vmatpush1.msra.mxu0 0.0
    %237 = vmatprep.subr.mxu0 0.0
    %238 = vmatpush1.msra.mxu0 0.0
    %239 = vmatprep.subr.mxu0 0.0
    %240 = vmatpush1.msra.mxu0 0.0
    %241 = vmatprep.subr.mxu0 0.0
    %242 = vmatpush1.msra.mxu0 0.0
    %243 = vmatprep.subr.mxu0 0.0
    %244 = vmatpush1.msra.mxu0 0.0
    %245 = vmatprep.subr.mxu0 0.0
    %246 = vmatpush1.msra.mxu0 0.0
    %247 = vmatprep.subr.mxu0 0.0
    %248 = vmatpush1.msra.mxu0 0.0
    %249 = vmatprep.subr.mxu0 0.0
    %250 = vmatpush1.msra.mxu0 0.0
    %251 = vmatprep.subr.mxu0 0.0
    %252 = vmatpush1.msra.mxu0 %v223
    %253 = vmatprep.subr.mxu0 0.0
    %254 = vmatpush1.msra.mxu0 %v222
    %255 = vmatprep.subr.mxu0 0.0
    %256 = vmatpush1.msra.mxu0 %v221
    %257 = vmatprep.subr.mxu0 0.0
    %258 = vmatpush1.msra.mxu0 %v220
    %259 = vmatprep.subr.mxu0 0.0
    %260 = vmatpush1.msra.mxu0 %v219
    %261 = vmatprep.subr.mxu0 0.0
    %262 = vmatpush1.msra.mxu0 %v218
    %263 = vmatprep.subr.mxu0 0.0
    %264 = vmatpush1.msra.mxu0 %v217
    %265 = vmatprep.subr.mxu0 0.0
    %266 = vmatpush1.msra.mxu0 %v216
    %267 = vmatprep.subr.mxu0 0.0
    %268 = vmatpush2.msra.mxu0 0.0
    %269 = vmatprep.subr.mxu0 0.0
    %270 = vmatpush2.msra.mxu0 0.0
    %271 = vmatprep.subr.mxu0 0.0
    %272 = vmatpush2.msra.mxu0 0.0
    %273 = vmatprep.subr.mxu0 0.0
    %274 = vmatpush2.msra.mxu0 0.0
    %275 = vmatprep.subr.mxu0 0.0
    %276 = vmatpush2.msra.mxu0 0.0
    %277 = vmatprep.subr.mxu0 0.0
    %278 = vmatpush2.msra.mxu0 0.0
    %279 = vmatprep.subr.mxu0 0.0
    %280 = vmatpush2.msra.mxu0 0.0
    %281 = vmatprep.subr.mxu0 0.0
    %282 = vmatpush2.msra.mxu0 0.0
    %283 = vmatprep.subr.mxu0 0.0
    %284 = vmatpush2.msra.mxu0 0.0
    %285 = vmatprep.subr.mxu0 0.0
    %286 = vmatpush2.msra.mxu0 0.0
    %287 = vmatprep.subr.mxu0 0.0
    %288 = vmatpush2.msra.mxu0 0.0
    %289 = vmatprep.subr.mxu0 0.0
    %290 = vmatpush2.msra.mxu0 0.0
    %291 = vmatprep.subr.mxu0 0.0
    %292 = vmatpush2.msra.mxu0 0.0
    %293 = vmatprep.subr.mxu0 0.0
    %294 = vmatpush2.msra.mxu0 0.0
    %295 = vmatprep.subr.mxu0 0.0
    %296 = vmatpush2.msra.mxu0 0.0
    %297 = vmatprep.subr.mxu0 0.0
    %298 = vmatpush2.msra.mxu0 0.0
    %299 = vmatprep.mubr.f32.mxu0 0.0
    %300 = vmatmul.mubr.f32.gmra.mxu0 %v233
    %v301 = vpop.f32.mrf.mxu0
    %v302 = vadd.f32 %v229, %v301
    %v303 = vpop.f32.mrf.mxu0
    %304 = vdwg.mxu0
    %vm305 = vcmask 123904
    %306 = vst.msk [vmem:[#allocation2] sm:$0x3] %vm305, %v302
    // Predicated region
    $region30: #{tpu_custom_call.1} parent=1 // pred_check
      _
    $region31: #{tpu_custom_call.1} parent=1 // pred_check_branch
      %308 = sbr.rel (0) target = $region33
    $region32: #{tpu_custom_call.1} parent=1 // pred_region
      %s310 = ssub.s32 32, 32
      %311 = vsyncadd [#allocation3], %s310
      %s313 = sshll.u32 [#allocation2], 4
      %s314 = int_to_ptr.vmem [resolvable:$true] %s313
      %316 = dma.vmem_to_hbm [thread:$0]  %s314, 32, %s7, [#allocation3]
    $region33: #{tpu_custom_call.1} parent=1 // pred_fallthru
      _
    // Predicated region
    $region34: #{tpu_custom_call.1} parent=1 // pred_check
      _
    $region35: #{tpu_custom_call.1} parent=1 // pred_check_branch
      %318 = sbr.rel (0) target = $region37
    $region36: #{tpu_custom_call.1} parent=1 // pred_region
      %319 = dma.done [#allocation3], 32
    $region37: #{tpu_custom_call.1} parent=1 // pred_fallthru
      _
    %320 = vsyncpa [#allocation3], 1

</llo_original>
